<compile_context>
chip_gen: v5e
topology: v5e:2x2
jax: 0.10.0
libtpu: 0.0.40
codegen_flags: <defaults>
</compile_context>

<pallas_src>
import functools

import jax
import jax.numpy as jnp
from jax import lax
from jax.experimental import pallas as pl
from jax.experimental.pallas import tpu as pltpu


# --------------------------- tiled linear (Pallas) ---------------------------

def _linear_kernel(x_ref, w_ref, b_ref, o_ref, acc_ref):
    @pl.when(pl.program_id(2) == 0)
    def _():
        acc_ref[...] = jnp.zeros_like(acc_ref)

    acc_ref[...] += jnp.dot(x_ref[...], w_ref[...],
                            preferred_element_type=jnp.float32)

    @pl.when(pl.program_id(2) == pl.num_programs(2) - 1)
    def _():
        o_ref[...] = (acc_ref[...] + b_ref[...]).astype(o_ref.dtype)


def _pick_tile(dim, want):
    # Tile only when the tile evenly divides the dim (keeps every block
    # (8,128)-legal, no partial-block edges); otherwise one full-extent block.
    # TODO(synk): pad ragged dims in the wrapper so huge ragged N/K cannot blow
    #             the (tighter on v7x) VMEM budget via the full-extent fallback.
    if dim > want and dim % want == 0:
        return want
    return dim


def linear_pallas(x2d, w, b, *, out_dtype=jnp.bfloat16, tm=256, tn=256, tk=512):
    """y = x @ w + b; bf16 operands on the MXU, f32 VMEM accumulator.

    Default tn/tk are multiples of 256 so the v6e/v7x 256-wide MXU stays full.
    """
    M, K = x2d.shape
    N = w.shape[1]
    x2d = x2d.astype(jnp.bfloat16)
    w = w.astype(jnp.bfloat16)
    b2 = b.astype(jnp.float32).reshape(1, N)
    tm = _pick_tile(M, tm)
    tn = _pick_tile(N, tn)
    tk = tk if K % tk == 0 else K          # K tiles must divide exactly
    grid = (pl.cdiv(M, tm), pl.cdiv(N, tn), K // tk)
    return pl.pallas_call(
        _linear_kernel,
        out_shape=jax.ShapeDtypeStruct((M, N), out_dtype),
        grid=grid,
        in_specs=[pl.BlockSpec((tm, tk), lambda i, j, k: (i, k)),
                  pl.BlockSpec((tk, tn), lambda i, j, k: (k, j)),
                  pl.BlockSpec((1, tn), lambda i, j, k: (0, j))],
        out_specs=pl.BlockSpec((tm, tn), lambda i, j, k: (i, j)),
        scratch_shapes=[pltpu.VMEM((tm, tn), jnp.float32)],
        compiler_params=pltpu.CompilerParams(
            dimension_semantics=("parallel", "parallel", "arbitrary")),
    )(x2d, w, b2)


def _apply_linear(x, w, b, *, out_dtype=jnp.bfloat16):
    lead = x.shape[:-1]
    y = linear_pallas(x.reshape(-1, x.shape[-1]), w, b, out_dtype=out_dtype)
    return y.reshape(*lead, -1)


# ----------------------- pltpu.roll direction probe --------------------------

_ROLL_LIKE_JNP = None


def _roll_matches_jnp_roll():
    """One-off probe: does pltpu.roll rotate like jnp.roll (i -> i + shift)?

    Guards the rel->abs skew against rotation-direction convention drift; the
    probe is a trivial (8, 128) kernel compiled/run once per process.
    """
    global _ROLL_LIKE_JNP
    if _ROLL_LIKE_JNP is None:
        def kernel(x_ref, o_ref):
            o_ref[...] = pltpu.roll(x_ref[...], shift=1, axis=1)

        x = jnp.arange(8 * 128, dtype=jnp.float32).reshape(8, 128)
        y = pl.pallas_call(
            kernel, out_shape=jax.ShapeDtypeStruct((8, 128), jnp.float32))(x)
        _ROLL_LIKE_JNP = bool(jnp.array_equal(y, jnp.roll(x, 1, axis=1)))
    return _ROLL_LIKE_JNP


# ------------------------- grouped attention (Pallas) ------------------------

def _attn_kernel(q_ref, k_ref, v_ref, e_ref, ub_ref, vb_ref, m_ref, o_ref, *,
                 heads, d_head, scale, roll_amounts):
    Tg = q_ref.shape[1]
    P = e_ref.shape[0]                      # padded relative axis (>= 2*Tg-1)
    neg_inf = jnp.finfo(jnp.float32).min

    # Hoisted out of the head loop (JAX does not CSE these broadcasts/compares)
    masked = m_ref[0] != 0                                    # (Tg, Tg) bool
    row = lax.broadcasted_iota(jnp.int32, (Tg, P), 0)
    lshift = (Tg - 1) - row                 # per-row left-rotate amount
    bit_masks = tuple((lshift & (1 << b)) != 0
                      for b in range(len(roll_amounts)))

    # qu/qv formed in-kernel from a single Q stream + tiny u/v bias rows;
    # the 1/sqrt(Dh) scale is folded into the operands (exact when pow-of-2).
    qu = (q_ref[0] + ub_ref[...]) * scale                     # (Tg, C) bf16
    qv = (q_ref[0] + vb_ref[...]) * scale

    dn = (((1,), (1,)), ((), ()))           # contract last dims, no transposes
    outs = []
    for h in range(heads):
        hs = slice(h * d_head, (h + 1) * d_head)
        k_h = k_ref[0, :, hs]                                 # (Tg, Dh) bf16
        v_h = v_ref[0, :, hs]
        e_h = e_ref[:, hs]                                    # (P, Dh)  bf16

        s_k = lax.dot_general(qu[:, hs], k_h, dn,
                              preferred_element_type=jnp.float32)   # (Tg, Tg)
        s_rel = lax.dot_general(qv[:, hs], e_h, dn,
                                preferred_element_type=jnp.float32)  # (Tg, P)

        # rel->abs skew: row i needs a left rotation by (Tg-1-i), applied as
        # log2(Tg) conditional static lane rotations (XLU).  Columns j < Tg
        # only ever read source columns <= 2*Tg-2 < P, and rotated-in lanes
        # land at columns >= Tg, so no extra masking is required.
        x = s_rel
        for amt, bm in zip(roll_amounts, bit_masks):
            x = jnp.where(bm, pltpu.roll(x, shift=amt, axis=1), x)
        s_abs = x[:, :Tg]

        scores = jnp.where(masked, neg_inf, s_k + s_abs)
        scores = scores - jnp.max(scores, axis=-1, keepdims=True)
        p = jnp.exp(scores)
        w = p * pl.reciprocal(jnp.sum(p, axis=-1, keepdims=True), approx=True)
        outs.append(jnp.dot(w.astype(v_h.dtype), v_h,
                            preferred_element_type=jnp.float32))

    # one lane-dense, 128-aligned (Tg, chunk) bf16 store per grid step
    o_ref[0] = jnp.concatenate(outs, axis=-1).astype(o_ref.dtype)


def attention_core(q, k, v, e, u_row, v_row, mask_g, *, num_heads, d_head):
    B, Tg, G = q.shape
    P = e.shape[0]
    assert G == num_heads * d_head

    # 128-lane-aligned head chunks: DMA aligned (Tg, chunk) slices per step and
    # give both TensorCores parallel grid steps even when B == 1.
    if d_head % 128 == 0:
        chunk = d_head
    elif 128 % d_head == 0 and G % 128 == 0:
        chunk = 128
    else:
        chunk = G                          # fallback: all heads per step
    heads = chunk // d_head
    n_chunks = G // chunk

    nbits = (Tg - 1).bit_length()
    if _roll_matches_jnp_roll():
        roll_amounts = tuple(P - (1 << b) for b in range(nbits))   # left rot
    else:
        roll_amounts = tuple(1 << b for b in range(nbits))

    kernel = functools.partial(_attn_kernel, heads=heads, d_head=d_head,
                               scale=1.0 / (d_head ** 0.5),
                               roll_amounts=roll_amounts)
    tile = pl.BlockSpec((1, Tg, chunk), lambda b, c: (b, 0, c))
    return pl.pallas_call(
        kernel,
        out_shape=jax.ShapeDtypeStruct((B, Tg, G), jnp.bfloat16),
        grid=(B, n_chunks),
        in_specs=[tile, tile, tile,
                  pl.BlockSpec((P, chunk), lambda b, c: (0, c)),
                  pl.BlockSpec((1, chunk), lambda b, c: (0, c)),
                  pl.BlockSpec((1, chunk), lambda b, c: (0, c)),
                  pl.BlockSpec((1, Tg, Tg), lambda b, c: (b, 0, 0))],
        out_specs=tile,
        compiler_params=pltpu.CompilerParams(
            dimension_semantics=("parallel", "parallel")),
    )(q, k, v, e, u_row, v_row, mask_g)


# ------------------------------- glue (JAX) ---------------------------------

def build_pos_encoding(max_len, d_model, group_size):
    pos_left = jnp.arange(max_len - 1, group_size % 2 - 1, -1, dtype=jnp.float32)
    pos_right = jnp.arange(0, -max_len, -1, dtype=jnp.float32)
    pos = jnp.concatenate([pos_left, pos_right])[:, None]
    steps = jnp.arange(0, d_model // 2, dtype=jnp.float32)[None, :]
    angles = pos / (10000.0 ** (2.0 * steps / d_model))
    pe = jnp.zeros((2 * max_len - group_size % 2, d_model), jnp.float32)
    pe = pe.at[:, 0::2].set(jnp.sin(angles))
    pe = pe.at[:, 1::2].set(jnp.cos(angles))
    return pe


def init_params(key, d_model, num_heads):
    ks = jax.random.split(key, 12)
    p = {}
    for i, name in enumerate(["q", "k", "v", "o", "p"]):
        p["w" + name] = (jax.random.normal(ks[2 * i], (d_model, d_model),
                                           jnp.float32) / jnp.sqrt(d_model))
        p["b" + name] = jax.random.normal(ks[2 * i + 1], (d_model,),
                                          jnp.float32) * 0.02
    bound = (6.0 / (num_heads + d_model // num_heads)) ** 0.5
    p["u"] = jax.random.uniform(ks[10], (d_model,), jnp.float32, -bound, bound)
    p["v"] = jax.random.uniform(ks[11], (d_model,), jnp.float32, -bound, bound)
    return p


def mhsa_forward(params, xq, xk, xv, mask, *, d_model, num_heads, group_size,
                 max_pos, pe):
    # NOTE: grouped self-attention assumes Tq == Tkv (as in the PyTorch module).
    B, Tq, _ = xq.shape
    Tkv = xk.shape[1]
    gs, H = group_size, num_heads
    d_head = gs * d_model // H

    # ---- projections (fused QKV for the self-attention path), bf16 MXU ----
    if xq is xk and xq is xv:
        w_qkv = jnp.concatenate([params["wq"], params["wk"], params["wv"]], 1)
        b_qkv = jnp.concatenate([params["bq"], params["bk"], params["bv"]])
        qkv = _apply_linear(xq, w_qkv, b_qkv)               # (B, Tq, 3*dm) bf16
        Q, K, V = jnp.split(qkv, 3, axis=-1)
    else:
        Q = _apply_linear(xq, params["wq"], params["bq"])
        K = _apply_linear(xk, params["wk"], params["bk"])
        V = _apply_linear(xv, params["wv"], params["bv"])

    # ---- group padding ----
    pad_Q = (gs - Tq % gs) % gs
    pad_KV = (gs - Tkv % gs) % gs
    Q = jnp.pad(Q, ((0, 0), (0, pad_Q), (0, 0)))
    K = jnp.pad(K, ((0, 0), (0, pad_KV), (0, 0)))
    V = jnp.pad(V, ((0, 0), (0, pad_KV), (0, 0)))
    m = jnp.pad(mask.astype(jnp.int32), ((0, 0), (0, pad_KV), (0, pad_Q)),
                constant_values=1)

    T = Q.shape[1]
    Tg = T // gs
    G = gs * d_model                      # = H * d_head, lane-dense grouped dim

    # ---- relative sinusoidal positional encodings (bf16 projection) ----
    # TODO(synk): cache E per static T; it depends only on (T, params).
    left = max_pos - T + gs // 2
    right = max_pos - gs % 2 + T - gs // 2
    E = _apply_linear(pe[left:right], params["wp"], params["bp"])  # (2T-gs, dm)
    R = 2 * Tg - 1
    P = -(-R // 128) * 128                # pad rel axis -> lane-aligned skew
    E_g = jnp.pad(E.reshape(R, G), ((0, P - R), (0, 0)))

    # grouped lane-dense layouts (free reshapes; no head transposes); Q ships
    # once, u/v go in as tiny (1, G) bias rows added inside the kernel.
    Q_g = Q.reshape(B, Tg, G)
    K_g = K.reshape(B, Tg, G)
    V_g = V.reshape(B, Tg, G)
    u_row = jnp.tile(params["u"], gs).reshape(1, G).astype(jnp.bfloat16)
    v_row = jnp.tile(params["v"], gs).reshape(1, G).astype(jnp.bfloat16)
    mask_g = m[:, ::gs, ::gs]                                  # (B, Tg, Tg) i32

    out = attention_core(Q_g, K_g, V_g, E_g, u_row, v_row, mask_g,
                         num_heads=H, d_head=d_head)           # (B, Tg, G) bf16
    out = out.reshape(B, T, d_model)[:, :T - pad_Q]
    return _apply_linear(out, params["wo"], params["bo"], out_dtype=jnp.float32)


# --------------------------- pure-JAX reference -----------------------------

def _rel_to_abs_ref(s):
    B, H, T1, T2 = s.shape
    s = jnp.pad(s, ((0, 0), (0, 0), (0, 0), (0, 1)))
    s = s.reshape(B, H, -1)
    s = jnp.pad(s, ((0, 0), (0, 0), (0, T2 - T1)))
    s = s.reshape(B, H, 1 + T1, T2)
    return s[:, :, :T1, T1 - 1:]


def mhsa_reference(params, xq, xk, xv, mask, *, d_model, num_heads, group_size,
                   max_pos, pe):
    B, Tq, _ = xq.shape
    Tkv = xk.shape[1]
    gs, H = group_size, num_heads
    d_head = gs * d_model // H
    lin = lambda x, w, b: x @ w + b
    Q = lin(xq, params["wq"], params["bq"])
    K = lin(xk, params["wk"], params["bk"])
    V = lin(xv, params["wv"], params["bv"])
    pad_Q = (gs - Tq % gs) % gs
    pad_KV = (gs - Tkv % gs) % gs
    Q = jnp.pad(Q, ((0, 0), (0, pad_Q), (0, 0)))
    K = jnp.pad(K, ((0, 0), (0, pad_KV), (0, 0)))
    V = jnp.pad(V, ((0, 0), (0, pad_KV), (0, 0)))
    m = jnp.pad(mask.astype(jnp.int32), ((0, 0), (0, pad_KV), (0, pad_Q)),
                constant_values=1)
    T = Q.shape[1]
    Qu, Qv = Q + params["u"], Q + params["v"]
    left = max_pos - T + gs // 2
    right = max_pos - gs % 2 + T - gs // 2
    E = lin(pe[left:right], params["wp"], params["bp"])[None].repeat(B, axis=0)
    resh = lambda x: x.reshape(B, -1, H, d_head).transpose(0, 2, 1, 3)
    Qu, Qv, Kh, Vh, Eh = resh(Qu), resh(Qv), resh(K), resh(V), resh(E)
    sK = Qu @ Kh.transpose(0, 1, 3, 2)
    sE = _rel_to_abs_ref(Qv @ Eh.transpose(0, 1, 3, 2))
    scores = (sK + sE) / (Kh.shape[-1] ** 0.5)
    mg = m[:, None, ::gs, ::gs]
    scores = jnp.where(mg != 0, jnp.finfo(scores.dtype).min, scores)
    w = jax.nn.softmax(scores, axis=-1)
    out = (w @ Vh).transpose(0, 2, 1, 3).reshape(B, -1, d_model)
    out = out[:, :out.shape[1] - pad_Q]
    return lin(out, params["wo"], params["bo"])


# ---------------------------------- main ------------------------------------

if __name__ == "__main__":
    B, T, d_model, num_heads, group_size, max_pos = 2, 30, 64, 4, 4, 40

    key = jax.random.PRNGKey(0)
    k_x, k_p = jax.random.split(key)
    x = jax.random.normal(k_x, (B, T, d_model), jnp.float32)

    # padding-style boolean mask (True = masked)
    lengths = jnp.array([30, 22])
    invalid = jnp.arange(T)[None, :] >= lengths[:, None]          # (B, T)
    mask = invalid[:, :, None] | invalid[:, None, :]              # (B, T, T)

    params = init_params(k_p, d_model, num_heads)
    pe = build_pos_encoding(max_pos, d_model, group_size)

    out = mhsa_forward(params, x, x, x, mask, d_model=d_model,
                       num_heads=num_heads, group_size=group_size,
                       max_pos=max_pos, pe=pe)
    out = jax.block_until_ready(out)

    ref = mhsa_reference(params, x, x, x, mask, d_model=d_model,
                         num_heads=num_heads, group_size=group_size,
                         max_pos=max_pos, pe=pe)

    assert out.shape == (B, T, d_model), out.shape
    assert bool(jnp.isfinite(out).all())
    # projections + attention run with bf16 operands (f32 accumulation), so
    # compare against the f32 reference with a bf16-appropriate tolerance.
    max_err = float(jnp.max(jnp.abs(out - ref)))
    rel_err = float(jnp.linalg.norm(out - ref) / jnp.linalg.norm(ref))
    assert max_err < 1.5e-1, f"max abs diff vs reference: {max_err}"
    assert rel_err < 5e-2, f"relative error vs reference: {rel_err}"
    print("KERNEL_OK")
</pallas_src>

<mosaic_0001>
module attributes {stable_mosaic.version = 11 : i64} {
  func.func @_linear_kernel(%arg0: i32, %arg1: i32, %arg2: i32, %arg3: memref<60x64xbf16, #tpu.memory_space<vmem>>, %arg4: memref<64x192xbf16, #tpu.memory_space<vmem>>, %arg5: memref<1x192xf32, #tpu.memory_space<vmem>>, %arg6: memref<60x192xbf16, #tpu.memory_space<vmem>>, %arg7: memref<60x192xf32, #tpu.memory_space<vmem>>) attributes {dimension_semantics = [#tpu.dimension_semantics<parallel>, #tpu.dimension_semantics<parallel>, #tpu.dimension_semantics<arbitrary>], iteration_bounds = array<i64: 1, 1, 1>, scalar_prefetch = 0 : i64, scratch_operands = 1 : i64, tpu.core_type = #tpu.core_type<tc>, window_params = [{transform_indices = @transform_0, window_bounds = array<i64: 60, 64>}, {transform_indices = @transform_1, window_bounds = array<i64: 64, 192>}, {transform_indices = @transform_2, window_bounds = array<i64: 1, 192>}, {transform_indices = @transform_3, window_bounds = array<i64: 60, 192>}]} {
    %c0_i32 = arith.constant 0 : i32
    %0 = arith.cmpi eq, %arg2, %c0_i32 : i32
    %1 = arith.extui %0 : i1 to i32
    %c0_i32_0 = arith.constant 0 : i32
    %2 = arith.cmpi ne, %1, %c0_i32_0 : i32
    scf.if %2 {
      %cst_10 = arith.constant 0.000000e+00 : f32
      %12 = vector.broadcast %cst_10 : f32 to vector<60x192xf32>
      %c0_11 = arith.constant 0 : index
      %c0_12 = arith.constant 0 : index
      %13 = vector.load %arg7[%c0_11, %c0_12] : memref<60x192xf32, #tpu.memory_space<vmem>>, vector<60x192xf32>
      tpu.vector_store %arg7[%c0_11, %c0_12], %12 {strides = array<i32>} : memref<60x192xf32, #tpu.memory_space<vmem>>, vector<60x192xf32>,
    } else {
    }
    %c0 = arith.constant 0 : index
    %c0_1 = arith.constant 0 : index
    %3 = vector.load %arg7[%c0, %c0_1] : memref<60x192xf32, #tpu.memory_space<vmem>>, vector<60x192xf32>
    %c0_2 = arith.constant 0 : index
    %c0_3 = arith.constant 0 : index
    %4 = vector.load %arg3[%c0_2, %c0_3] : memref<60x64xbf16, #tpu.memory_space<vmem>>, vector<60x64xbf16>
    %c0_4 = arith.constant 0 : index
    %c0_5 = arith.constant 0 : index
    %5 = vector.load %arg4[%c0_4, %c0_5] : memref<64x192xbf16, #tpu.memory_space<vmem>>, vector<64x192xbf16>
    %cst = arith.constant dense<0.000000e+00> : vector<60x192xf32>
    %6 = tpu.matmul %4, %5, %cst {dimension_numbers = #tpu.dot_dimension_numbers<[1], [0], [0], [1], [0, 0, 1, 1], [], []>} : vector<60x64xbf16>, vector<64x192xbf16>, vector<60x192xf32> -> vector<60x192xf32>
    %7 = arith.addf %3, %6 : vector<60x192xf32>
    %c0_6 = arith.constant 0 : index
    %c0_7 = arith.constant 0 : index
    %8 = vector.load %arg7[%c0_6, %c0_7] : memref<60x192xf32, #tpu.memory_space<vmem>>, vector<60x192xf32>
    tpu.vector_store %arg7[%c0_6, %c0_7], %7 {strides = array<i32>} : memref<60x192xf32, #tpu.memory_space<vmem>>, vector<60x192xf32>,
    %c0_i32_8 = arith.constant 0 : i32
    %9 = arith.cmpi eq, %arg2, %c0_i32_8 : i32
    %10 = arith.extui %9 : i1 to i32
    %c0_i32_9 = arith.constant 0 : i32
    %11 = arith.cmpi ne, %10, %c0_i32_9 : i32
    scf.if %11 {
      %c0_10 = arith.constant 0 : index
      %c0_11 = arith.constant 0 : index
      %12 = vector.load %arg7[%c0_10, %c0_11] : memref<60x192xf32, #tpu.memory_space<vmem>>, vector<60x192xf32>
      %c0_12 = arith.constant 0 : index
      %c0_13 = arith.constant 0 : index
      %13 = vector.load %arg5[%c0_12, %c0_13] : memref<1x192xf32, #tpu.memory_space<vmem>>, vector<1x192xf32>
      %14 = vector.broadcast %13 : vector<1x192xf32> to vector<60x192xf32>
      %15 = arith.addf %12, %14 : vector<60x192xf32>
      %16 = arith.truncf %15 : vector<60x192xf32> to vector<60x192xbf16>
      %c0_14 = arith.constant 0 : index
      %c0_15 = arith.constant 0 : index
      %17 = vector.load %arg6[%c0_14, %c0_15] : memref<60x192xbf16, #tpu.memory_space<vmem>>, vector<60x192xbf16>
      tpu.vector_store %arg6[%c0_14, %c0_15], %16 {strides = array<i32>} : memref<60x192xbf16, #tpu.memory_space<vmem>>, vector<60x192xbf16>,
    } else {
    }
    return
  }
  func.func @transform_0(%arg0: i32, %arg1: i32, %arg2: i32) -> (i32, i32) {
    %c0_i32 = arith.constant 0 : i32
    return %arg0, %arg2 : i32, i32
  }
  func.func @transform_1(%arg0: i32, %arg1: i32, %arg2: i32) -> (i32, i32) {
    %c0_i32 = arith.constant 0 : i32
    return %arg2, %arg1 : i32, i32
  }
  func.func @transform_2(%arg0: i32, %arg1: i32, %arg2: i32) -> (i32, i32) {
    %c0_i32 = arith.constant 0 : i32
    %c0_i32_0 = arith.constant 0 : i32
    return %c0_i32, %arg1 : i32, i32
  }
  func.func @transform_3(%arg0: i32, %arg1: i32, %arg2: i32) -> (i32, i32) {
    %c0_i32 = arith.constant 0 : i32
    return %arg0, %arg1 : i32, i32
  }
}

</mosaic_0001>

<llo_original>
// kernel: tpu_custom_call.1
$region0: #{tpu_custom_call.1}
  #allocation0 [shape = 'u32[]', space=smem, size = 0x4, offset = 0x4, fixed_abs, tag = 'smem constant byte address 0x4 - core index']
  #allocation1 [shape = 'u32[72,128]{1,0:T(1,128)}', space=vmem, size = 0x9000, scoped, tag = 'internal scratch']
  #allocation2 [shape = 'f32[60,192]{1,0:T(8,128)}', space=vmem, size = 0x10000, scoped, tag = 'scratch operand']
  %s0 = inlined_call_operand.hbm [shape: bf16[60,64], index: 0, kind: input, shape index: {}]
  %s1 = inlined_call_operand.hbm [shape: bf16[64,192], index: 1, kind: input, shape index: {}]
  %s2 = inlined_call_operand.hbm [shape: f32[1,192], index: 2, kind: input, shape index: {}]
  %s3 = inlined_call_operand.hbm [shape: bf16[60,192], index: 3, kind: output, shape index: {}]
  %s4 = sld [smem:[#allocation0]]
  $region42: #{tpu_custom_call.1} parent=0
    _
  %s6 = ssub.s32 1, %s4
  %s7 = scalar_select 0, %s6, %s4
  $region1: #{tpu_custom_call.1} parent=0
    #allocation3 [shape = 'u8[16384]{0}', space=vmem, size = 0x4000, scoped, tag = 'input window, operand 0, single buffered']
    #allocation4 [shape = 's32[1]{0}', space=sflag, size = 0x4, scoped, tag = 'scoped memory for tpu_custom_call.1']
    #allocation5 [shape = 's32[1]{0}', space=sflag, size = 0x4, scoped, tag = 'scoped memory for tpu_custom_call.1']
    #allocation6 [shape = 'u8[32768]{0}', space=vmem, size = 0x8000, scoped, tag = 'input window, operand 1, single buffered']
    #allocation7 [shape = 's32[1]{0}', space=sflag, size = 0x4, scoped, tag = 'scoped memory for tpu_custom_call.1']
    #allocation8 [shape = 'u8[1024]{0}', space=vmem, size = 0x400, scoped, tag = 'input window, operand 2, single buffered']
    #allocation9 [shape = 'u8[32768]{0}', space=vmem, size = 0x8000, scoped, tag = 'output window, operand 0, single buffered']
    %8 = vsyncpa [#allocation4], 0
    %9 = vsyncpa [#allocation7], 0
    %10 = vsyncpa [#allocation5], 0
    // Predicated region
    $region2: #{tpu_custom_call.1} parent=1 // pred_check
      _
    $region3: #{tpu_custom_call.1} parent=1 // pred_check_branch
      %12 = sbr.rel (0) target = $region5
    $region4: #{tpu_custom_call.1} parent=1 // pred_region
      %14 = vsyncadd [#allocation4], 0
      %s15 = sshll.u32 %s0, 4
      %s16 = int_to_ptr.hbm [resolvable:$true] %s15
      %s17 = sshll.u32 [#allocation3], 4
      %s18 = int_to_ptr.vmem [resolvable:$true] %s17
      %23 = dma.hbm_to_vmem [thread:$0]  %s16, 512, %s18, [#allocation4], 64, 64, 4
    $region5: #{tpu_custom_call.1} parent=1 // pred_fallthru
      _
    // Predicated region
    $region6: #{tpu_custom_call.1} parent=1 // pred_check
      _
    $region7: #{tpu_custom_call.1} parent=1 // pred_check_branch
      %25 = sbr.rel (0) target = $region9
    $region8: #{tpu_custom_call.1} parent=1 // pred_region
      %27 = vsyncadd [#allocation7], 0
      %s28 = sshll.u32 %s1, 4
      %s29 = int_to_ptr.hbm [resolvable:$true] %s28
      %s30 = sshll.u32 [#allocation6], 4
      %s31 = int_to_ptr.vmem [resolvable:$true] %s30
      %36 = dma.hbm_to_vmem [thread:$0]  %s29, 1024, %s31, [#allocation7], 128, 128, 8
    $region9: #{tpu_custom_call.1} parent=1 // pred_fallthru
      _
    // Predicated region
    $region10: #{tpu_custom_call.1} parent=1 // pred_check
      _
    $region11: #{tpu_custom_call.1} parent=1 // pred_check_branch
      %38 = sbr.rel (0) target = $region13
    $region12: #{tpu_custom_call.1} parent=1 // pred_region
      %40 = vsyncadd [#allocation7], 0
      %s42 = sshll.u32 %s2, 4
      %s43 = int_to_ptr.hbm [resolvable:$true] %s42
      %s44 = sshll.u32 [#allocation8], 4
      %s45 = int_to_ptr.vmem [resolvable:$true] %s44
      %47 = dma.hbm_to_vmem [thread:$0]  %s43, 32, %s45, [#allocation7]
    $region13: #{tpu_custom_call.1} parent=1 // pred_fallthru
      _
    // Predicated region
    $region14: #{tpu_custom_call.1} parent=1 // pred_check
      _
    $region15: #{tpu_custom_call.1} parent=1 // pred_check_branch
      %49 = sbr.rel (0) target = $region17
    $region16: #{tpu_custom_call.1} parent=1 // pred_region
      %51 = dma.done [#allocation4], 512
    $region17: #{tpu_custom_call.1} parent=1 // pred_fallthru
      _
    // Predicated region
    $region18: #{tpu_custom_call.1} parent=1 // pred_check
      _
    $region19: #{tpu_custom_call.1} parent=1 // pred_check_branch
      %53 = sbr.rel (0) target = $region21
    $region20: #{tpu_custom_call.1} parent=1 // pred_region
      %55 = dma.done [#allocation7], 1024
    $region21: #{tpu_custom_call.1} parent=1 // pred_fallthru
      _
    // Predicated region
    $region22: #{tpu_custom_call.1} parent=1 // pred_check
      _
    $region23: #{tpu_custom_call.1} parent=1 // pred_check_branch
      %57 = sbr.rel (0) target = $region25
    $region24: #{tpu_custom_call.1} parent=1 // pred_region
      %59 = dma.done [#allocation7], 32
    $region25: #{tpu_custom_call.1} parent=1 // pred_fallthru
      _
    %p61 = scmp.eq.s32.totalorder 0, 0
    // Predicated region
    $region26: #{tpu_custom_call.1} parent=1 // pred_check
      %p62 = pneg %p61
    $region27: #{tpu_custom_call.1} parent=1 // pred_check_branch
      %64 = sbr.rel (%p62) target = $region29
    $region28: #{tpu_custom_call.1} parent=1 // pred_region
      %65 = vst [vmem:[#allocation2] sm:$0xff] 0.0
      %vm66 = vcmask 523264
      %67 = vst.msk [vmem:[#allocation2 + $0x8] sm:$0xff] %vm66, 0.0
      %68 = vst [vmem:[#allocation2 + $0x10] sm:$0xff] 0.0
      %69 = vst.msk [vmem:[#allocation2 + $0x18] sm:$0xff] %vm66, 0.0
      %70 = vst [vmem:[#allocation2 + $0x20] sm:$0xff] 0.0
      %71 = vst.msk [vmem:[#allocation2 + $0x28] sm:$0xff] %vm66, 0.0
      %72 = vst [vmem:[#allocation2 + $0x30] sm:$0xff] 0.0
      %73 = vst.msk [vmem:[#allocation2 + $0x38] sm:$0xff] %vm66, 0.0
      %74 = vst [vmem:[#allocation2 + $0x40] sm:$0xff] 0.0
      %75 = vst.msk [vmem:[#allocation2 + $0x48] sm:$0xff] %vm66, 0.0
      %76 = vst [vmem:[#allocation2 + $0x50] sm:$0xff] 0.0
      %77 = vst.msk [vmem:[#allocation2 + $0x58] sm:$0xff] %vm66, 0.0
      %78 = vst [vmem:[#allocation2 + $0x60] sm:$0xff] 0.0
      %79 = vst.msk [vmem:[#allocation2 + $0x68] sm:$0xff] %vm66, 0.0
      %80 = vst [vmem:[#allocation2 + $0x70] sm:$0xf] 0.0
      %vm81 = vcmask 519168
      %82 = vst.msk [vmem:[#allocation2 + $0x78] sm:$0xf] %vm81, 0.0
    $region29: #{tpu_custom_call.1} parent=1 // pred_fallthru
      _
    %v83 = vld [vmem:[#allocation2] sm:$0xff]
    %v84 = vld [vmem:[#allocation2 + $0x8] sm:$0xff]
    %v85 = vld [vmem:[#allocation2 + $0x10] sm:$0xff]
    %v86 = vld [vmem:[#allocation2 + $0x18] sm:$0xff]
    %v87 = vld [vmem:[#allocation2 + $0x20] sm:$0xff]
    %v88 = vld [vmem:[#allocation2 + $0x28] sm:$0xff]
    %v89 = vld [vmem:[#allocation2 + $0x30] sm:$0xff]
    %v90 = vld [vmem:[#allocation2 + $0x38] sm:$0xff]
    %v91 = vld [vmem:[#allocation2 + $0x40] sm:$0xff]
    %v92 = vld [vmem:[#allocation2 + $0x48] sm:$0xff]
    %v93 = vld [vmem:[#allocation2 + $0x50] sm:$0xff]
    %v94 = vld [vmem:[#allocation2 + $0x58] sm:$0xff]
    %v95 = vld [vmem:[#allocation2 + $0x60] sm:$0xff]
    %v96 = vld [vmem:[#allocation2 + $0x68] sm:$0xff]
    %v97 = vld [vmem:[#allocation2 + $0x70] sm:$0xf]
    %v98 = vld [vmem:[#allocation2 + $0x78] sm:$0xf]
    %v99 = vld [vmem:[#allocation3] sm:$0xf]
    %v100 = vld [vmem:[#allocation3 + $0x4] sm:$0xf]
    %v101 = vld [vmem:[#allocation3 + $0x8] sm:$0xf]
    %v102 = vld [vmem:[#allocation3 + $0xc] sm:$0xf]
    %v103 = vld [vmem:[#allocation3 + $0x10] sm:$0xf]
    %v104 = vld [vmem:[#allocation3 + $0x14] sm:$0xf]
    %v105 = vld [vmem:[#allocation3 + $0x18] sm:$0xf]
    %v106 = vld [vmem:[#allocation3 + $0x1c] sm:$0x3]
    %v107 = vld [vmem:[#allocation6] sm:$0xff]
    %v108 = vld [vmem:[#allocation6 + $0x8] sm:$0xff]
    %v109 = vld [vmem:[#allocation6 + $0x10] sm:$0xff]
    %v110 = vld [vmem:[#allocation6 + $0x18] sm:$0xff]
    %v111 = vld [vmem:[#allocation6 + $0x20] sm:$0xff]
    %v112 = vld [vmem:[#allocation6 + $0x28] sm:$0xff]
    %v113 = vld [vmem:[#allocation6 + $0x30] sm:$0xff]
    %v114 = vld [vmem:[#allocation6 + $0x38] sm:$0xff]
    %v123 = vunpack.c.l.b16 %v99
    %v124 = vunpack.c.l.b16 %v100
    %v125 = vunpack.c.l.b16 %v101
    %v126 = vunpack.c.l.b16 %v102
    %v127 = vunpack.c.l.b16 %v103
    %v128 = vunpack.c.l.b16 %v104
    %v129 = vunpack.c.l.b16 %v105
    %v130 = vunpack.c.l.b16 %v106
    %v131 = vpack.c.b16 %v124, %v123
    %v132 = vpack.c.b16 %v126, %v125
    %v133 = vpack.c.b16 %v128, %v127
    %v134 = vpack.c.b16 %v130, %v129
    %v143 = vunpack.c.l.b16 %v107
    %v144 = vunpack.c.h.b16 %v107
    %v145 = vunpack.c.l.b16 %v108
    %v146 = vunpack.c.h.b16 %v108
    %v147 = vunpack.c.l.b16 %v109
    %v148 = vunpack.c.h.b16 %v109
    %v149 = vunpack.c.l.b16 %v110
    %v150 = vunpack.c.h.b16 %v110
    %v151 = vunpack.c.l.b16 %v111
    %v152 = vunpack.c.h.b16 %v111
    %v153 = vunpack.c.l.b16 %v112
    %v154 = vunpack.c.h.b16 %v112
    %v155 = vunpack.c.l.b16 %v113
    %v156 = vunpack.c.h.b16 %v113
    %v157 = vunpack.c.l.b16 %v114
    %v158 = vunpack.c.h.b16 %v114
    %v159 = vpack.c.b16 %v145, %v143
    %v160 = vpack.c.b16 %v146, %v144
    %v161 = vpack.c.b16 %v149, %v147
    %v162 = vpack.c.b16 %v150, %v148
    %v163 = vpack.c.b16 %v153, %v151
    %v164 = vpack.c.b16 %v154, %v152
    %v165 = vpack.c.b16 %v157, %v155
    %v166 = vpack.c.b16 %v158, %v156
    %vm175 = vcmask 523264
    %v177 = vsel %vm175, %v131, 0
    %v180 = vsel %vm175, %v132, 0
    %v183 = vsel %vm175, %v133, 0
    %v186 = vsel %vm175, %v134, 0
    %188 = vmatpush.bf16.msra.mxu0 0
    %189 = vmatpush.bf16.msra.mxu0 0
    %190 = vmatpush.bf16.msra.mxu0 0
    %191 = vmatpush.bf16.msra.mxu0 0
    %192 = vmatpush.bf16.msra.mxu0 %v165
    %193 = vmatpush.bf16.msra.mxu0 %v163
    %194 = vmatpush.bf16.msra.mxu0 %v161
    %195 = vmatpush.bf16.msra.mxu0 %v159
    %196 = vmatmul.bf16.gmra.mxu0 %v177
    %v197 = vpop.f32.mrf.mxu0
    %v198 = vadd.f32 0.0, %v197
    %v199 = vpop.f32.mrf.mxu0
    %v200 = vadd.f32 0.0, %v199
    %201 = vmatmul.bf16.gmra.mxu0 %v180
    %v202 = vpop.f32.mrf.mxu0
    %v203 = vadd.f32 0.0, %v202
    %v204 = vpop.f32.mrf.mxu0
    %v205 = vadd.f32 0.0, %v204
    %206 = vmatmul.bf16.gmra.mxu0 %v183
    %v207 = vpop.f32.mrf.mxu0
    %v208 = vadd.f32 0.0, %v207
    %v209 = vpop.f32.mrf.mxu0
    %v210 = vadd.f32 0.0, %v209
    %211 = vmatmul.bf16.gmra.mxu0 %v186
    %v212 = vpop.f32.mrf.mxu0
    %v213 = vadd.f32 0.0, %v212
    %v214 = vpop.f32.mrf.mxu0
    %v215 = vadd.f32 0.0, %v214
    %216 = vdwg.mxu0
    %217 = vmatpush.bf16.msra.mxu0 0
    %218 = vmatpush.bf16.msra.mxu0 0
    %219 = vmatpush.bf16.msra.mxu0 0
    %220 = vmatpush.bf16.msra.mxu0 0
    %221 = vmatpush.bf16.msra.mxu0 %v166
    %222 = vmatpush.bf16.msra.mxu0 %v164
    %223 = vmatpush.bf16.msra.mxu0 %v162
    %224 = vmatpush.bf16.msra.mxu0 %v160
    %225 = vmatmul.bf16.gmra.mxu0 %v177
    %v226 = vpop.f32.mrf.mxu0
    %v227 = vadd.f32 0.0, %v226
    %v228 = vpop.f32.mrf.mxu0
    %v229 = vadd.f32 0.0, %v228
    %230 = vmatmul.bf16.gmra.mxu0 %v180
    %v231 = vpop.f32.mrf.mxu0
    %v232 = vadd.f32 0.0, %v231
    %v233 = vpop.f32.mrf.mxu0
    %v234 = vadd.f32 0.0, %v233
    %235 = vmatmul.bf16.gmra.mxu0 %v183
    %v236 = vpop.f32.mrf.mxu0
    %v237 = vadd.f32 0.0, %v236
    %v238 = vpop.f32.mrf.mxu0
    %v239 = vadd.f32 0.0, %v238
    %240 = vmatmul.bf16.gmra.mxu0 %v186
    %v241 = vpop.f32.mrf.mxu0
    %v242 = vadd.f32 0.0, %v241
    %v243 = vpop.f32.mrf.mxu0
    %v244 = vadd.f32 0.0, %v243
    %245 = vdwg.mxu0
    %v246 = vadd.f32 %v83, %v198
    %v247 = vadd.f32 %v84, %v227
    %v248 = vadd.f32 %v85, %v200
    %v249 = vadd.f32 %v86, %v229
    %v250 = vadd.f32 %v87, %v203
    %v251 = vadd.f32 %v88, %v232
    %v252 = vadd.f32 %v89, %v205
    %v253 = vadd.f32 %v90, %v234
    %v254 = vadd.f32 %v91, %v208
    %v255 = vadd.f32 %v92, %v237
    %v256 = vadd.f32 %v93, %v210
    %v257 = vadd.f32 %v94, %v239
    %v258 = vadd.f32 %v95, %v213
    %v259 = vadd.f32 %v96, %v242
    %v260 = vadd.f32 %v97, %v215
    %v261 = vadd.f32 %v98, %v244
    %262 = vst [vmem:[#allocation2] sm:$0xff] %v246
    %263 = vst.msk [vmem:[#allocation2 + $0x8] sm:$0xff] %vm175, %v247
    %264 = vst [vmem:[#allocation2 + $0x10] sm:$0xff] %v248
    %265 = vst.msk [vmem:[#allocation2 + $0x18] sm:$0xff] %vm175, %v249
    %266 = vst [vmem:[#allocation2 + $0x20] sm:$0xff] %v250
    %267 = vst.msk [vmem:[#allocation2 + $0x28] sm:$0xff] %vm175, %v251
    %268 = vst [vmem:[#allocation2 + $0x30] sm:$0xff] %v252
    %269 = vst.msk [vmem:[#allocation2 + $0x38] sm:$0xff] %vm175, %v253
    %270 = vst [vmem:[#allocation2 + $0x40] sm:$0xff] %v254
    %271 = vst.msk [vmem:[#allocation2 + $0x48] sm:$0xff] %vm175, %v255
    %272 = vst [vmem:[#allocation2 + $0x50] sm:$0xff] %v256
    %273 = vst.msk [vmem:[#allocation2 + $0x58] sm:$0xff] %vm175, %v257
    %274 = vst [vmem:[#allocation2 + $0x60] sm:$0xff] %v258
    %275 = vst.msk [vmem:[#allocation2 + $0x68] sm:$0xff] %vm175, %v259
    %276 = vst [vmem:[#allocation2 + $0x70] sm:$0xf] %v260
    %vm277 = vcmask 519168
    %278 = vst.msk [vmem:[#allocation2 + $0x78] sm:$0xf] %vm277, %v261
    // Predicated region
    $region30: #{tpu_custom_call.1} parent=1 // pred_check
      %p279 = pneg %p61
    $region31: #{tpu_custom_call.1} parent=1 // pred_check_branch
      %281 = sbr.rel (%p279) target = $region33
    $region32: #{tpu_custom_call.1} parent=1 // pred_region
      %v282 = vld [vmem:[#allocation2] sm:$0xff]
      %v283 = vld [vmem:[#allocation2 + $0x8] sm:$0xff]
      %v284 = vld [vmem:[#allocation2 + $0x10] sm:$0xff]
      %v285 = vld [vmem:[#allocation2 + $0x18] sm:$0xff]
      %v286 = vld [vmem:[#allocation2 + $0x20] sm:$0xff]
      %v287 = vld [vmem:[#allocation2 + $0x28] sm:$0xff]
      %v288 = vld [vmem:[#allocation2 + $0x30] sm:$0xff]
      %v289 = vld [vmem:[#allocation2 + $0x38] sm:$0xff]
      %v290 = vld [vmem:[#allocation2 + $0x40] sm:$0xff]
      %v291 = vld [vmem:[#allocation2 + $0x48] sm:$0xff]
      %v292 = vld [vmem:[#allocation2 + $0x50] sm:$0xff]
      %v293 = vld [vmem:[#allocation2 + $0x58] sm:$0xff]
      %v294 = vld [vmem:[#allocation2 + $0x60] sm:$0xff]
      %v295 = vld [vmem:[#allocation2 + $0x68] sm:$0xff]
      %v296 = vld [vmem:[#allocation2 + $0x70] sm:$0xf]
      %v297 = vld [vmem:[#allocation2 + $0x78] sm:$0xf]
      %v298 = vld [vmem:[#allocation8] sm:$0x3]
      %v300 = vperm.slane %v298, 0
      %v301 = vperm.slane %v298, 1
      %v304 = vadd.f32 %v282, %v300
      %v305 = vadd.f32 %v283, %v301
      %v306 = vadd.f32 %v284, %v300
      %v307 = vadd.f32 %v285, %v301
      %v308 = vadd.f32 %v286, %v300
      %v309 = vadd.f32 %v287, %v301
      %v310 = vadd.f32 %v288, %v300
      %v311 = vadd.f32 %v289, %v301
      %v312 = vadd.f32 %v290, %v300
      %v313 = vadd.f32 %v291, %v301
      %v314 = vadd.f32 %v292, %v300
      %v315 = vadd.f32 %v293, %v301
      %v316 = vadd.f32 %v294, %v300
      %v317 = vadd.f32 %v295, %v301
      %v318 = vadd.f32 %v296, %v300
      %v319 = vadd.f32 %v297, %v301
      %v320 = vpack.c.bf16 %v305, %v304
      %v321 = vpack.c.bf16 %v307, %v306
      %v322 = vpack.c.bf16 %v309, %v308
      %v323 = vpack.c.bf16 %v311, %v310
      %v324 = vpack.c.bf16 %v313, %v312
      %v325 = vpack.c.bf16 %v315, %v314
      %v326 = vpack.c.bf16 %v317, %v316
      %v327 = vpack.c.bf16 %v319, %v318
      %vm328 = vcmask 1043456
      %vm329 = vcmask 523268
      %vm330 = vmor %vm329, %vm328
      %331 = vst.msk [vmem:[#allocation9] sm:$0xff] %vm330, %v320
      %332 = vst.msk [vmem:[#allocation9 + $0x8] sm:$0xff] %vm330, %v321
      %333 = vst.msk [vmem:[#allocation9 + $0x10] sm:$0xff] %vm330, %v322
      %334 = vst.msk [vmem:[#allocation9 + $0x18] sm:$0xff] %vm330, %v323
      %335 = vst.msk [vmem:[#allocation9 + $0x20] sm:$0xff] %vm330, %v324
      %336 = vst.msk [vmem:[#allocation9 + $0x28] sm:$0xff] %vm330, %v325
      %337 = vst.msk [vmem:[#allocation9 + $0x30] sm:$0xff] %vm330, %v326
      %vm338 = vcmask 1041408
      %vm339 = vcmask 521220
      %vm340 = vmor %vm339, %vm338
      %341 = vst.msk [vmem:[#allocation9 + $0x38] sm:$0x33] %vm340, %v327
    $region33: #{tpu_custom_call.1} parent=1 // pred_fallthru
      _
    // Predicated region
    $region34: #{tpu_custom_call.1} parent=1 // pred_check
      _
    $region35: #{tpu_custom_call.1} parent=1 // pred_check_branch
      %343 = sbr.rel (0) target = $region37
    $region36: #{tpu_custom_call.1} parent=1 // pred_region
      %345 = vsyncadd [#allocation5], 0
      %s346 = sshll.u32 [#allocation9], 4
      %s347 = int_to_ptr.vmem [resolvable:$true] %s346
      %s348 = sshll.u32 %s3, 4
      %s349 = int_to_ptr.hbm [resolvable:$true] %s348
      %354 = dma.vmem_to_hbm [thread:$0]  %s347, 1024, %s349, [#allocation5], 128, 128, 8
    $region37: #{tpu_custom_call.1} parent=1 // pred_fallthru
      _
    // Predicated region
    $region38: #{tpu_custom_call.1} parent=1 // pred_check
      _
    $region39: #{tpu_custom_call.1} parent=1 // pred_check_branch
      %356 = sbr.rel (0) target = $region41
    $region40: #{tpu_custom_call.1} parent=1 // pred_region
      %358 = dma.done [#allocation5], 1024
    $region41: #{tpu_custom_call.1} parent=1 // pred_fallthru
      _
    %359 = vsyncpa [#allocation4], 1
    %360 = vsyncpa [#allocation7], 1
    %361 = vsyncpa [#allocation5], 1

</llo_original>
